<compile_context>
chip_gen: v7x
topology: tpu7x:2x2x1
jax: 0.10.0
libtpu: 0.0.40
codegen_flags: <defaults>
</compile_context>

<pallas_src>
import jax
import jax.numpy as jnp
from jax import lax
from jax.experimental import pallas as pl
from jax.experimental.pallas import tpu as pltpu

DIM_SCALE = 4
EPS = 1e-5


def _expand_shuffle_norm_kernel(x_ref, w_ref, a_ref, bg_ref, beta_ref, o_ref):
    # x_ref:    (tbh, W, C)          input pixels (channels-last)
    # w_ref:    (C, 4C)    bf16      expand weight (in x out)
    # a_ref:    (4C, 16)   f32       group-averaging matrix (one-hot / c_out)
    # bg_ref:   (16, 4C)   f32       group->channel broadcast with gamma folded
    # beta_ref: (1, 4C)    f32       beta tiled over the 16 groups
    # o_ref:    (tbh, 4, W, C)       pixel-shuffled, normalized output
    tbh, p, W, C = o_ref.shape
    rows = tbh * W

    x = x_ref[...].reshape(rows, C)
    # bf16 MXU matmul, f32 accumulation.
    y = jnp.dot(x.astype(jnp.bfloat16), w_ref[...],
                preferred_element_type=jnp.float32)            # (rows, 4C)

    # --- per-group LayerNorm statistics on the MXU (no lane-split reshape) ---
    a = a_ref[...]
    mean = jnp.dot(y, a, preferred_element_type=jnp.float32)         # (rows, 16)
    mean_sq = jnp.dot(y * y, a, preferred_element_type=jnp.float32)  # (rows, 16)
    var = mean_sq - mean * mean
    inv_std = lax.rsqrt(var + EPS)                                   # EUP slot

    # Broadcast per-group scale/shift back to channels via MXU; gamma is
    # pre-folded into bg so the epilogue is one multiply-add per element.
    bg = bg_ref[...]
    scale = jnp.dot(inv_std, bg, preferred_element_type=jnp.float32)          # inv_std * gamma
    shift = jnp.dot(-mean * inv_std, bg, preferred_element_type=jnp.float32)  # -mean*inv_std*gamma
    out = (y * scale + (shift + beta_ref[...])).astype(o_ref.dtype)           # (rows, 4C)

    # --- fused pixel shuffle ---
    # out[r, p1*C + p2*c_out + c'] belongs to output pixel (4h+p1, 4w+p2),
    # channel c'.  For a fixed p1 the C-wide chunk, reshaped to (tbh, W, C),
    # is exactly the (tbh, W, C)-slab of the (B*H, 4, W, C) output.
    for p1 in range(p):
        chunk = out[:, p1 * C:(p1 + 1) * C]                  # (rows, C)
        o_ref[:, p1, :, :] = chunk.reshape(tbh, W, C)


def _pick_tbh(BH, W, C, out_itemsize, target_rows=256, tile_budget_bytes=24 << 20):
    """Largest divisor of B*H giving ~target_rows pixels/step within a VMEM budget."""

    def tile_bytes(t):
        rows = t * W
        # double-buffered in/out tiles + f32 temporaries for the expanded activation
        return (2 * rows * C * 4
                + 2 * rows * 4 * C * out_itemsize
                + 3 * rows * 4 * C * 4)

    def largest_divisor_leq(n, k):
        k = max(1, min(n, k))
        while n % k:
            k -= 1
        return k

    t = largest_divisor_leq(BH, max(1, target_rows // max(W, 1)))
    while t > 1 and tile_bytes(t) > tile_budget_bytes:
        t = largest_divisor_leq(BH, t - 1)
    # keep >= 2 grid steps so both v7x TensorCores get work (when possible)
    if BH // t < 2:
        t = largest_divisor_leq(BH, max(1, BH // 2))
    return t


def final_patch_expand_2d(x, w_expand, gamma, beta, *, target_rows=256):
    """Fused Final_PatchExpand2D.

    x:        (B, H, W, C)  channels-last, like the PyTorch module.
    w_expand: (C, 4*C)      nn.Linear(C, 4C, bias=False).weight, pre-transposed.
    gamma, beta: (C//4,)    LayerNorm(C//4) affine parameters.
    Returns (B, 4H, 4W, C//4) in x.dtype.
    """
    B, H, W, C = x.shape
    p = DIM_SCALE
    assert C % p == 0, "dim must be divisible by dim_scale"
    c_out = C // p
    four_c = p * C
    G = p * p                     # 16 LayerNorm groups per input pixel
    BH = B * H

    out_dtype = x.dtype
    tbh = _pick_tbh(BH, W, C, jnp.dtype(out_dtype).itemsize, target_rows=target_rows)
    grid = (BH // tbh,)

    x3 = x.reshape(BH, W, C)                     # metadata-only reshape
    w_bf16 = w_expand.astype(jnp.bfloat16)       # bf16 MXU path, f32 accumulate

    # Constant matrices for MXU-based group statistics / broadcast.
    gid = jnp.arange(four_c, dtype=jnp.int32) // c_out
    groups = jnp.arange(G, dtype=jnp.int32)
    a_mat = (gid[:, None] == groups[None, :]).astype(jnp.float32) / c_out      # (4C, 16)
    gamma_t = jnp.tile(gamma.astype(jnp.float32), (G,))                        # (4C,)
    bg_mat = ((groups[:, None] == gid[None, :]).astype(jnp.float32)
              * gamma_t[None, :])                                              # (16, 4C)
    beta_t = jnp.tile(beta.astype(jnp.float32), (G,)).reshape(1, four_c)

    # Raise the scoped VMEM limit only when the default would be tight.
    rows = tbh * W
    est = (2 * rows * C * x.dtype.itemsize
           + 2 * rows * four_c * jnp.dtype(out_dtype).itemsize
           + 2 * C * four_c * 2           # resident bf16 weight (double-buffered)
           + 4 * rows * four_c * 4)       # in-kernel f32 temporaries allowance
    cp_kwargs = {}
    if est > (30 << 20):
        cp_kwargs["vmem_limit_bytes"] = int(min(est + (8 << 20), 64 << 20))

    out5 = pl.pallas_call(
        _expand_shuffle_norm_kernel,
        out_shape=jax.ShapeDtypeStruct((BH, p, W, C), out_dtype),
        grid_spec=pltpu.PrefetchScalarGridSpec(
            num_scalar_prefetch=0,
            grid=grid,
            in_specs=[
                pl.BlockSpec((tbh, W, C), lambda i: (i, 0, 0)),   # x tile
                pl.BlockSpec((C, four_c), lambda i: (0, 0)),      # weight (resident; constant index -> no re-DMA)
                pl.BlockSpec((four_c, G), lambda i: (0, 0)),      # group-averaging matrix
                pl.BlockSpec((G, four_c), lambda i: (0, 0)),      # gamma-folded broadcast matrix
                pl.BlockSpec((1, four_c), lambda i: (0, 0)),      # beta (tiled)
            ],
            out_specs=pl.BlockSpec((tbh, p, W, C), lambda i: (i, 0, 0, 0)),
        ),
        compiler_params=pltpu.CompilerParams(
            dimension_semantics=("parallel",), **cp_kwargs),
    )(x3, w_bf16, a_mat, bg_mat, beta_t)

    # (B*H, 4, W, C) is bit-identical in memory to (B, 4H, 4W, C//4) under
    # 'b h w (p1 p2 c) -> b (h p1) (w p2) c', so this reshape is free.
    return out5.reshape(B, H * p, W * p, c_out)


def _reference(x, w_expand, gamma, beta, *, matmul_dtype=jnp.float32):
    B, H, W, C = x.shape
    p = DIM_SCALE
    c_out = C // p
    y = jnp.einsum("bhwc,cd->bhwd",
                   x.astype(matmul_dtype), w_expand.astype(matmul_dtype),
                   preferred_element_type=jnp.float32)
    y = y.reshape(B, H, W, p, p, c_out)
    y = jnp.transpose(y, (0, 1, 3, 2, 4, 5)).reshape(B, H * p, W * p, c_out)
    mean = jnp.mean(y, axis=-1, keepdims=True)
    var = jnp.mean((y - mean) ** 2, axis=-1, keepdims=True)
    return (y - mean) / jnp.sqrt(var + EPS) * gamma + beta


if __name__ == "__main__":
    key = jax.random.PRNGKey(0)
    B, H, W, C = 2, 8, 8, 32     # dim = 32, dim_scale = 4 -> output channels 8

    k_x, k_w, k_g, k_b = jax.random.split(key, 4)
    x = jax.random.normal(k_x, (B, H, W, C), dtype=jnp.float32)
    # nn.Linear(C, 4C, bias=False).weight is (4C, C); stored pre-transposed (C, 4C).
    w_expand = jax.random.normal(k_w, (C, DIM_SCALE * C), dtype=jnp.float32) * 0.05
    gamma = 1.0 + 0.1 * jax.random.normal(k_g, (C // DIM_SCALE,), dtype=jnp.float32)
    beta = 0.1 * jax.random.normal(k_b, (C // DIM_SCALE,), dtype=jnp.float32)

    out = jax.block_until_ready(final_patch_expand_2d(x, w_expand, gamma, beta))

    assert out.shape == (B, H * DIM_SCALE, W * DIM_SCALE, C // DIM_SCALE), out.shape
    # Strict check vs a reference using the same bf16 matmul precision.
    ref_bf16 = _reference(x, w_expand, gamma, beta, matmul_dtype=jnp.bfloat16)
    assert jnp.allclose(out, ref_bf16, atol=1e-2, rtol=1e-2), "mismatch vs bf16-matmul reference"
    # Loose sanity check vs the full-f32 module semantics.
    ref_f32 = _reference(x, w_expand, gamma, beta, matmul_dtype=jnp.float32)
    assert jnp.allclose(out, ref_f32, atol=1e-1, rtol=1e-1), "mismatch vs f32 reference"

    print("KERNEL_OK")
</pallas_src>

<mosaic_0001>
module attributes {stable_mosaic.version = 11 : i64} {
  func.func @_expand_shuffle_norm_kernel(%arg0: i32, %arg1: memref<8x8x32xf32, #tpu.memory_space<vmem>>, %arg2: memref<32x128xbf16, #tpu.memory_space<vmem>>, %arg3: memref<128x16xf32, #tpu.memory_space<vmem>>, %arg4: memref<16x128xf32, #tpu.memory_space<vmem>>, %arg5: memref<1x128xf32, #tpu.memory_space<vmem>>, %arg6: memref<8x4x8x32xf32, #tpu.memory_space<vmem>>) attributes {dimension_semantics = [#tpu.dimension_semantics<parallel>], iteration_bounds = array<i64: 2>, scalar_prefetch = 0 : i64, scratch_operands = 0 : i64, tpu.core_type = #tpu.core_type<tc>, window_params = [{transform_indices = @transform_0, window_bounds = array<i64: 8, 8, 32>}, {pipeline_mode = #tpu.pipeline_mode<synchronous>, transform_indices = @transform_1, window_bounds = array<i64: 32, 128>}, {pipeline_mode = #tpu.pipeline_mode<synchronous>, transform_indices = @transform_2, window_bounds = array<i64: 128, 16>}, {pipeline_mode = #tpu.pipeline_mode<synchronous>, transform_indices = @transform_3, window_bounds = array<i64: 16, 128>}, {pipeline_mode = #tpu.pipeline_mode<synchronous>, transform_indices = @transform_4, window_bounds = array<i64: 1, 128>}, {transform_indices = @transform_5, window_bounds = array<i64: 8, 4, 8, 32>}]} {
    %c0 = arith.constant 0 : index
    %c0_0 = arith.constant 0 : index
    %c0_1 = arith.constant 0 : index
    %0 = vector.load %arg1[%c0, %c0_0, %c0_1] : memref<8x8x32xf32, #tpu.memory_space<vmem>>, vector<8x8x32xf32>
    %1 = vector.shape_cast %0 : vector<8x8x32xf32> to vector<64x32xf32>
    %2 = arith.truncf %1 : vector<64x32xf32> to vector<64x32xbf16>
    %c0_2 = arith.constant 0 : index
    %c0_3 = arith.constant 0 : index
    %3 = vector.load %arg2[%c0_2, %c0_3] : memref<32x128xbf16, #tpu.memory_space<vmem>>, vector<32x128xbf16>
    %cst = arith.constant dense<0.000000e+00> : vector<64x128xf32>
    %4 = tpu.matmul %2, %3, %cst {dimension_numbers = #tpu.dot_dimension_numbers<[1], [0], [0], [1], [0, 0, 1, 1], [], []>} : vector<64x32xbf16>, vector<32x128xbf16>, vector<64x128xf32> -> vector<64x128xf32>
    %c0_4 = arith.constant 0 : index
    %c0_5 = arith.constant 0 : index
    %5 = vector.load %arg3[%c0_4, %c0_5] : memref<128x16xf32, #tpu.memory_space<vmem>>, vector<128x16xf32>
    %cst_6 = arith.constant dense<0.000000e+00> : vector<64x16xf32>
    %6 = tpu.matmul %4, %5, %cst_6 {dimension_numbers = #tpu.dot_dimension_numbers<[1], [0], [0], [1], [0, 0, 1, 1], [], []>} : vector<64x128xf32>, vector<128x16xf32>, vector<64x16xf32> -> vector<64x16xf32>
    %7 = arith.mulf %4, %4 : vector<64x128xf32>
    %cst_7 = arith.constant dense<0.000000e+00> : vector<64x16xf32>
    %8 = tpu.matmul %7, %5, %cst_7 {dimension_numbers = #tpu.dot_dimension_numbers<[1], [0], [0], [1], [0, 0, 1, 1], [], []>} : vector<64x128xf32>, vector<128x16xf32>, vector<64x16xf32> -> vector<64x16xf32>
    %9 = arith.mulf %6, %6 : vector<64x16xf32>
    %10 = arith.subf %8, %9 : vector<64x16xf32>
    %cst_8 = arith.constant 9.99999974E-6 : f32
    %11 = vector.broadcast %cst_8 : f32 to vector<64x16xf32>
    %12 = arith.addf %10, %11 : vector<64x16xf32>
    %13 = math.rsqrt %12 : vector<64x16xf32>
    %c0_9 = arith.constant 0 : index
    %c0_10 = arith.constant 0 : index
    %14 = vector.load %arg4[%c0_9, %c0_10] : memref<16x128xf32, #tpu.memory_space<vmem>>, vector<16x128xf32>
    %cst_11 = arith.constant dense<0.000000e+00> : vector<64x128xf32>
    %15 = tpu.matmul %13, %14, %cst_11 {dimension_numbers = #tpu.dot_dimension_numbers<[1], [0], [0], [1], [0, 0, 1, 1], [], []>} : vector<64x16xf32>, vector<16x128xf32>, vector<64x128xf32> -> vector<64x128xf32>
    %cst_12 = arith.constant 0.000000e+00 : f32
    %16 = vector.broadcast %cst_12 : f32 to vector<64x16xf32>
    %17 = arith.subf %16, %6 : vector<64x16xf32>
    %18 = arith.mulf %17, %13 : vector<64x16xf32>
    %cst_13 = arith.constant dense<0.000000e+00> : vector<64x128xf32>
    %19 = tpu.matmul %18, %14, %cst_13 {dimension_numbers = #tpu.dot_dimension_numbers<[1], [0], [0], [1], [0, 0, 1, 1], [], []>} : vector<64x16xf32>, vector<16x128xf32>, vector<64x128xf32> -> vector<64x128xf32>
    %20 = arith.mulf %4, %15 : vector<64x128xf32>
    %c0_14 = arith.constant 0 : index
    %c0_15 = arith.constant 0 : index
    %21 = vector.load %arg5[%c0_14, %c0_15] : memref<1x128xf32, #tpu.memory_space<vmem>>, vector<1x128xf32>
    %22 = vector.broadcast %21 : vector<1x128xf32> to vector<64x128xf32>
    %23 = arith.addf %19, %22 : vector<64x128xf32>
    %24 = arith.addf %20, %23 : vector<64x128xf32>
    %25 = vector.extract_strided_slice %24 {offsets = [0, 0], sizes = [64, 32], strides = [1, 1]} : vector<64x128xf32> to vector<64x32xf32>
    %26 = vector.shape_cast %25 : vector<64x32xf32> to vector<8x8x32xf32>
    %c0_16 = arith.constant 0 : index
    %c0_17 = arith.constant 0 : index
    %c0_18 = arith.constant 0 : index
    %c0_19 = arith.constant 0 : index
    %27 = vector.load %arg6[%c0_16, %c0_17, %c0_18, %c0_19] : memref<8x4x8x32xf32, #tpu.memory_space<vmem>>, vector<8x1x8x32xf32>
    %28 = vector.shape_cast %27 : vector<8x1x8x32xf32> to vector<8x8x32xf32>
    %29 = vector.shape_cast %26 : vector<8x8x32xf32> to vector<8x1x8x32xf32>
    tpu.vector_store %arg6[%c0_16, %c0_17, %c0_18, %c0_19], %29 {strides = array<i32>} : memref<8x4x8x32xf32, #tpu.memory_space<vmem>>, vector<8x1x8x32xf32>,
    %30 = vector.extract_strided_slice %24 {offsets = [0, 32], sizes = [64, 32], strides = [1, 1]} : vector<64x128xf32> to vector<64x32xf32>
    %31 = vector.shape_cast %30 : vector<64x32xf32> to vector<8x8x32xf32>
    %c0_20 = arith.constant 0 : index
    %c1 = arith.constant 1 : index
    %c0_21 = arith.constant 0 : index
    %c0_22 = arith.constant 0 : index
    %32 = vector.load %arg6[%c0_20, %c1, %c0_21, %c0_22] : memref<8x4x8x32xf32, #tpu.memory_space<vmem>>, vector<8x1x8x32xf32>
    %33 = vector.shape_cast %32 : vector<8x1x8x32xf32> to vector<8x8x32xf32>
    %34 = vector.shape_cast %31 : vector<8x8x32xf32> to vector<8x1x8x32xf32>
    tpu.vector_store %arg6[%c0_20, %c1, %c0_21, %c0_22], %34 {strides = array<i32>} : memref<8x4x8x32xf32, #tpu.memory_space<vmem>>, vector<8x1x8x32xf32>,
    %35 = vector.extract_strided_slice %24 {offsets = [0, 64], sizes = [64, 32], strides = [1, 1]} : vector<64x128xf32> to vector<64x32xf32>
    %36 = vector.shape_cast %35 : vector<64x32xf32> to vector<8x8x32xf32>
    %c0_23 = arith.constant 0 : index
    %c2 = arith.constant 2 : index
    %c0_24 = arith.constant 0 : index
    %c0_25 = arith.constant 0 : index
    %37 = vector.load %arg6[%c0_23, %c2, %c0_24, %c0_25] : memref<8x4x8x32xf32, #tpu.memory_space<vmem>>, vector<8x1x8x32xf32>
    %38 = vector.shape_cast %37 : vector<8x1x8x32xf32> to vector<8x8x32xf32>
    %39 = vector.shape_cast %36 : vector<8x8x32xf32> to vector<8x1x8x32xf32>
    tpu.vector_store %arg6[%c0_23, %c2, %c0_24, %c0_25], %39 {strides = array<i32>} : memref<8x4x8x32xf32, #tpu.memory_space<vmem>>, vector<8x1x8x32xf32>,
    %40 = vector.extract_strided_slice %24 {offsets = [0, 96], sizes = [64, 32], strides = [1, 1]} : vector<64x128xf32> to vector<64x32xf32>
    %41 = vector.shape_cast %40 : vector<64x32xf32> to vector<8x8x32xf32>
    %c0_26 = arith.constant 0 : index
    %c3 = arith.constant 3 : index
    %c0_27 = arith.constant 0 : index
    %c0_28 = arith.constant 0 : index
    %42 = vector.load %arg6[%c0_26, %c3, %c0_27, %c0_28] : memref<8x4x8x32xf32, #tpu.memory_space<vmem>>, vector<8x1x8x32xf32>
    %43 = vector.shape_cast %42 : vector<8x1x8x32xf32> to vector<8x8x32xf32>
    %44 = vector.shape_cast %41 : vector<8x8x32xf32> to vector<8x1x8x32xf32>
    tpu.vector_store %arg6[%c0_26, %c3, %c0_27, %c0_28], %44 {strides = array<i32>} : memref<8x4x8x32xf32, #tpu.memory_space<vmem>>, vector<8x1x8x32xf32>,
    return
  }
  func.func @transform_0(%arg0: i32) -> (i32, i32, i32) {
    %c0_i32 = arith.constant 0 : i32
    %c0_i32_0 = arith.constant 0 : i32
    %c0_i32_1 = arith.constant 0 : i32
    return %arg0, %c0_i32, %c0_i32_0 : i32, i32, i32
  }
  func.func @transform_1(%arg0: i32) -> (i32, i32) {
    %c0_i32 = arith.constant 0 : i32
    %c0_i32_0 = arith.constant 0 : i32
    %c0_i32_1 = arith.constant 0 : i32
    return %c0_i32, %c0_i32_0 : i32, i32
  }
  func.func @transform_2(%arg0: i32) -> (i32, i32) {
    %c0_i32 = arith.constant 0 : i32
    %c0_i32_0 = arith.constant 0 : i32
    %c0_i32_1 = arith.constant 0 : i32
    return %c0_i32, %c0_i32_0 : i32, i32
  }
  func.func @transform_3(%arg0: i32) -> (i32, i32) {
    %c0_i32 = arith.constant 0 : i32
    %c0_i32_0 = arith.constant 0 : i32
    %c0_i32_1 = arith.constant 0 : i32
    return %c0_i32, %c0_i32_0 : i32, i32
  }
  func.func @transform_4(%arg0: i32) -> (i32, i32) {
    %c0_i32 = arith.constant 0 : i32
    %c0_i32_0 = arith.constant 0 : i32
    %c0_i32_1 = arith.constant 0 : i32
    return %c0_i32, %c0_i32_0 : i32, i32
  }
  func.func @transform_5(%arg0: i32) -> (i32, i32, i32, i32) {
    %c0_i32 = arith.constant 0 : i32
    %c0_i32_0 = arith.constant 0 : i32
    %c0_i32_1 = arith.constant 0 : i32
    %c0_i32_2 = arith.constant 0 : i32
    return %arg0, %c0_i32, %c0_i32_0, %c0_i32_1 : i32, i32, i32, i32
  }
}

</mosaic_0001>

<llo_original>
// kernel: tpu_custom_call.1
$region0: #{tpu_custom_call.1}
  #allocation0 [shape = 'u32[]', space=smem, size = 0x4, offset = 0x4, fixed_abs, tag = 'smem constant byte address 0x4 - core index']
  #allocation1 [shape = 'u32[144,128]{1,0:T(1,128)}', space=vmem, size = 0x12000, scoped, tag = 'internal scratch']
  %s0 = inlined_call_operand.vmem [shape: f32[16,8,32], index: 0, kind: input, shape index: {}]
  %s1 = inlined_call_operand.vmem [shape: bf16[32,128], index: 1, kind: input, shape index: {}]
  %s2 = inlined_call_operand.vmem [shape: f32[128,16], index: 2, kind: input, shape index: {}]
  %s3 = inlined_call_operand.hbm [shape: f32[16,128], index: 3, kind: input, shape index: {}]
  %s4 = inlined_call_operand.vmem [shape: f32[1,128], index: 4, kind: input, shape index: {}]
  %s5 = inlined_call_operand.hbm [shape: f32[16,4,8,32], index: 5, kind: output, shape index: {}]
  %s6 = sld [smem:[#allocation0]]
  $region57: #{tpu_custom_call.1} parent=0
    _
  %s8 = ssub.s32 1, %s6
  %s9 = scalar_select 0, %s8, %s6
  $region1: #{tpu_custom_call.1} parent=0
    #allocation2 [shape = 'u8[8192]{0}', space=vmem, size = 0x2000, scoped, tag = 'input window, operand 3, single buffered']
    #allocation3 [shape = 's32[2]{0}', space=sflag, size = 0x8, scoped, tag = 'scoped memory for tpu_custom_call.1']
    #allocation4 [shape = 's32[2]{0}', space=sflag, size = 0x8, scoped, tag = 'scoped memory for tpu_custom_call.1']
    #allocation5 [shape = 'u8[262144]{0}', space=vmem, size = 0x40000, scoped, tag = 'output window, operand 0']
    %10 = vsyncpa [#allocation3], 0
    %11 = vsyncpa [#allocation4], 0
    %s12 = scalar_lea.sflag [#allocation4], 1
    %13 = vsyncpa %s12, 0
    loop: start=0, step=1, limit=4
    $region2: #{tpu_custom_call.1} parent=1 // loop_pre_header
      _
    $region3: #{tpu_custom_call.1} parent=1 // loop_header
      %s15 = sphi 0, %s19
      %p16 = scmp.ge.s32.totalorder %s15, 4
      %s25 = sphi 0, %s27
      %s28 = sphi 0, %s25
      %s29 = sphi 0, %s28
      %s45 = sphi 0, %s29
      %s49 = sphi 0, %s49
      %s51 = sphi 0, %s49
      %s52 = sphi 0, %s51
      %s66 = sphi 0, %s52
      %s70 = sphi 0, %s70
      %s72 = sphi 0, %s70
      %s73 = sphi 0, %s72
      %s87 = sphi 0, %s73
      %s91 = sphi 0, %s91
      %s93 = sphi 0, %s91
      %s94 = sphi 0, %s93
      %s108 = sphi 0, %s94
      %s112 = sphi 0, %s112
      %s114 = sphi 0, %s112
      %s115 = sphi 0, %s114
      %s129 = sphi 0, %s115
      %s135 = sphi 0, %s137
      %s138 = sphi 0, %s135
      %s139 = sphi 0, %s138
      %s155 = sphi 0, %s139
    $region4: #{tpu_custom_call.1} parent=1 // loop_header_branch
      %18 = sbr.rel (%p16) target = $region8
    $region5: #{tpu_custom_call.1} parent=1 // loop_body
      %s20 = ssub.s32 %s15, 1
      %s21 = ssub.s32 %s15, 2
      %s22 = sadd.s32 %s15, 1
      %s23 = ssub.s32 %s15, %s22
      %p24 = scmp.eq.s32.totalorder %s23, 0
      %s26 = sadd.s32 %s25, 1
      %s27 = scalar_select %p24, %s25, %s26
      %p30 = pneg %p24
      %p31 = scmp.eq.s32.totalorder %s15, 1
      %p32 = por %p30, %p31
      %p33 = scmp.ne.s32.totalorder %s25, %s28
      %p34 = scmp.eq.s32.totalorder %s15, 0
      %p35 = por %p33, %p34
      %p36 = scmp.ne.s32.totalorder %s25, %s28
      %p37 = scmp.eq.s32.totalorder %s20, 1
      %p38 = por %p36, %p37
      %p39 = scmp.ne.s32.totalorder %s28, %s29
      %p40 = scmp.eq.s32.totalorder %s20, 0
      %p41 = por %p39, %p40
      %p42 = scmp.ne.s32.totalorder %s28, %s29
      %p43 = scmp.eq.s32.totalorder %s21, 1
      %p44 = por %p42, %p43
      %p46 = scmp.ne.s32.totalorder %s29, %s45
      %p47 = scmp.eq.s32.totalorder %s21, 0
      %p48 = por %p46, %p47
      %s50 = sadd.s32 %s49, 1
      %p53 = scmp.eq.s32.totalorder %s15, 1
      %p54 = scmp.ne.s32.totalorder %s49, %s51
      %p55 = scmp.eq.s32.totalorder %s15, 0
      %p56 = por %p54, %p55
      %p57 = scmp.ne.s32.totalorder %s49, %s51
      %p58 = scmp.eq.s32.totalorder %s20, 1
      %p59 = por %p57, %p58
      %p60 = scmp.ne.s32.totalorder %s51, %s52
      %p61 = scmp.eq.s32.totalorder %s20, 0
      %p62 = por %p60, %p61
      %p63 = scmp.ne.s32.totalorder %s51, %s52
      %p64 = scmp.eq.s32.totalorder %s21, 1
      %p65 = por %p63, %p64
      %p67 = scmp.ne.s32.totalorder %s52, %s66
      %p68 = scmp.eq.s32.totalorder %s21, 0
      %p69 = por %p67, %p68
      %s71 = sadd.s32 %s70, 1
      %p74 = scmp.eq.s32.totalorder %s15, 1
      %p75 = scmp.ne.s32.totalorder %s70, %s72
      %p76 = scmp.eq.s32.totalorder %s15, 0
      %p77 = por %p75, %p76
      %p78 = scmp.ne.s32.totalorder %s70, %s72
      %p79 = scmp.eq.s32.totalorder %s20, 1
      %p80 = por %p78, %p79
      %p81 = scmp.ne.s32.totalorder %s72, %s73
      %p82 = scmp.eq.s32.totalorder %s20, 0
      %p83 = por %p81, %p82
      %p84 = scmp.ne.s32.totalorder %s72, %s73
      %p85 = scmp.eq.s32.totalorder %s21, 1
      %p86 = por %p84, %p85
      %p88 = scmp.ne.s32.totalorder %s73, %s87
      %p89 = scmp.eq.s32.totalorder %s21, 0
      %p90 = por %p88, %p89
      %s92 = sadd.s32 %s91, 1
      %p95 = scmp.eq.s32.totalorder %s15, 1
      %p96 = scmp.ne.s32.totalorder %s91, %s93
      %p97 = scmp.eq.s32.totalorder %s15, 0
      %p98 = por %p96, %p97
      %p99 = scmp.ne.s32.totalorder %s91, %s93
      %p100 = scmp.eq.s32.totalorder %s20, 1
      %p101 = por %p99, %p100
      %p102 = scmp.ne.s32.totalorder %s93, %s94
      %p103 = scmp.eq.s32.totalorder %s20, 0
      %p104 = por %p102, %p103
      %p105 = scmp.ne.s32.totalorder %s93, %s94
      %p106 = scmp.eq.s32.totalorder %s21, 1
      %p107 = por %p105, %p106
      %p109 = scmp.ne.s32.totalorder %s94, %s108
      %p110 = scmp.eq.s32.totalorder %s21, 0
      %p111 = por %p109, %p110
      %s113 = sadd.s32 %s112, 1
      %p116 = scmp.eq.s32.totalorder %s15, 1
      %p117 = scmp.ne.s32.totalorder %s112, %s114
      %p118 = scmp.eq.s32.totalorder %s15, 0
      %p119 = por %p117, %p118
      %p120 = scmp.ne.s32.totalorder %s112, %s114
      %p121 = scmp.eq.s32.totalorder %s20, 1
      %p122 = por %p120, %p121
      %p123 = scmp.ne.s32.totalorder %s114, %s115
      %p124 = scmp.eq.s32.totalorder %s20, 0
      %p125 = por %p123, %p124
      %p126 = scmp.ne.s32.totalorder %s114, %s115
      %p127 = scmp.eq.s32.totalorder %s21, 1
      %p128 = por %p126, %p127
      %p130 = scmp.ne.s32.totalorder %s115, %s129
      %p131 = scmp.eq.s32.totalorder %s21, 0
      %p132 = por %p130, %p131
      %s133 = ssub.s32 %s15, %s22
      %p134 = scmp.eq.s32.totalorder %s133, 0
      %s136 = sadd.s32 %s135, 1
      %s137 = scalar_select %p134, %s135, %s136
      %p140 = pneg %p134
      %p141 = scmp.eq.s32.totalorder %s15, 1
      %p142 = por %p140, %p141
      %p143 = scmp.ne.s32.totalorder %s135, %s138
      %p144 = scmp.eq.s32.totalorder %s15, 0
      %p145 = por %p143, %p144
      %p146 = scmp.ne.s32.totalorder %s135, %s138
      %p147 = scmp.eq.s32.totalorder %s20, 1
      %p148 = por %p146, %p147
      %p149 = scmp.ne.s32.totalorder %s138, %s139
      %p150 = scmp.eq.s32.totalorder %s20, 0
      %p151 = por %p149, %p150
      %p152 = scmp.ne.s32.totalorder %s138, %s139
      %p153 = scmp.eq.s32.totalorder %s21, 1
      %p154 = por %p152, %p153
      %p156 = scmp.ne.s32.totalorder %s139, %s155
      %p157 = scmp.eq.s32.totalorder %s21, 0
      %p158 = por %p156, %p157
      %p159 = scmp.le.s32.totalorder 1, %s15
      %p160 = scmp.lt.s32.totalorder %s15, 3
      %p161 = pnand %p159, %p160
      %p162 = pneg %p161
      // Predicated region
      $region9: #{tpu_custom_call.1} parent=5 // pred_check
        _
      $region10: #{tpu_custom_call.1} parent=5 // pred_check_branch
        %164 = sbr.rel (%p161) target = $region12
      $region11: #{tpu_custom_call.1} parent=5 // pred_region
        %s165 = ssub.s32 %s15, 1
        // Predicated region
        $region13: #{tpu_custom_call.1} parent=11 // pred_check
          %p166 = pneg %p62
        $region14: #{tpu_custom_call.1} parent=11 // pred_check_branch
          %168 = sbr.rel (%p166) target = $region16
        $region15: #{tpu_custom_call.1} parent=11 // pred_region
          _
        $region16: #{tpu_custom_call.1} parent=11 // pred_fallthru
          _
        // Predicated region
        $region17: #{tpu_custom_call.1} parent=11 // pred_check
          %p169 = pneg %p83
        $region18: #{tpu_custom_call.1} parent=11 // pred_check_branch
          %171 = sbr.rel (%p169) target = $region20
        $region19: #{tpu_custom_call.1} parent=11 // pred_region
          _
        $region20: #{tpu_custom_call.1} parent=11 // pred_fallthru
          _
        // Predicated region
        $region21: #{tpu_custom_call.1} parent=11 // pred_check
          %p172 = pneg %p104
        $region22: #{tpu_custom_call.1} parent=11 // pred_check_branch
          %174 = sbr.rel (%p172) target = $region24
        $region23: #{tpu_custom_call.1} parent=11 // pred_region
          %s176 = ssub.s32 256, 256
          %177 = vsyncadd [#allocation3], %s176
          %s178 = sshll.u32 [#allocation2], 4
          %s179 = int_to_ptr.vmem [resolvable:$true] %s178
          %184 = dma.hbm_to_vmem [thread:$0]  %s3, 256, %s179, [#allocation3], 128, 128, 8
        $region24: #{tpu_custom_call.1} parent=11 // pred_fallthru
          _
        // Predicated region
        $region25: #{tpu_custom_call.1} parent=11 // pred_check
          %p185 = pneg %p125
        $region26: #{tpu_custom_call.1} parent=11 // pred_check_branch
          %187 = sbr.rel (%p185) target = $region28
        $region27: #{tpu_custom_call.1} parent=11 // pred_region
          _
        $region28: #{tpu_custom_call.1} parent=11 // pred_fallthru
          _
      $region12: #{tpu_custom_call.1} parent=5 // pred_fallthru
        _
      %p188 = scmp.lt.s32.totalorder %s15, 2
      // Predicated region
      $region29: #{tpu_custom_call.1} parent=5 // pred_check
        %p189 = pneg %p188
      $region30: #{tpu_custom_call.1} parent=5 // pred_check_branch
        %191 = sbr.rel (%p189) target = $region32
      $region31: #{tpu_custom_call.1} parent=5 // pred_region
        // Predicated region
        $region33: #{tpu_custom_call.1} parent=31 // pred_check
          %p192 = pneg %p35
        $region34: #{tpu_custom_call.1} parent=31 // pred_check_branch
          %194 = sbr.rel (%p192) target = $region36
        $region35: #{tpu_custom_call.1} parent=31 // pred_region
          %s195 = smul.u32 8, %s15
          %p196 = scmp.lt.s32.totalorder %s195, 15
          %s197 = scalar_select %p196, %s195, 15
          %s198 = smul.addr %s197, 8
          %s199 = scalar_lea.vmem %s0, %s198
          %s200 = smul.u32 8, %s15
        $region36: #{tpu_custom_call.1} parent=31 // pred_fallthru
          _
      $region32: #{tpu_custom_call.1} parent=5 // pred_fallthru
        _
      %p201 = scmp.le.s32.totalorder 1, %s15
      %p202 = scmp.lt.s32.totalorder %s15, 3
      %p203 = pnand %p201, %p202
      %p204 = pneg %p203
      // Predicated region
      $region37: #{tpu_custom_call.1} parent=5 // pred_check
        _
      $region38: #{tpu_custom_call.1} parent=5 // pred_check_branch
        %206 = sbr.rel (%p203) target = $region40
      $region39: #{tpu_custom_call.1} parent=5 // pred_region
        %s207 = ssub.s32 %s15, 1
        // Predicated region
        $region41: #{tpu_custom_call.1} parent=39 // pred_check
          %p208 = pneg %p104
        $region42: #{tpu_custom_call.1} parent=39 // pred_check_branch
          %210 = sbr.rel (%p208) target = $region44
        $region43: #{tpu_custom_call.1} parent=39 // pred_region
          %211 = dma.done [#allocation3], 256
        $region44: #{tpu_custom_call.1} parent=39 // pred_fallthru
          _
        %s212 = smul.u32 8, %s20
        %p213 = scmp.lt.s32.totalorder %s212, 15
        %s214 = scalar_select %p213, %s212, 15
        %s215 = smul.addr %s214, 8
        %s216 = scalar_lea.vmem %s0, %s215
        %p217 = pneg %p41
        %p218 = pneg %p38
        %p219 = pneg %p62
        %p220 = pneg %p59
        %p221 = pneg %p83
        %p222 = pneg %p80
        %p223 = pneg %p104
        %p224 = pneg %p101
        %p225 = pneg %p125
        %p226 = pneg %p122
        %p227 = pneg %p151
        %p228 = pneg %p148
        %s229 = sand.u32 %s138, 1
        %s230 = scalar_lea.sflag [#allocation4], %s229
        %s231 = sand.u32 %s138, 1
        %s232 = smul.addr %s231, 256
        %s233 = scalar_lea.vmem [#allocation5], %s232
        %s234 = smul.u32 8, %s20
        %p235 = scmp.lt.s32.totalorder %s234, 15
        %s236 = scalar_select %p235, %s234, 15
        %s237 = smul.addr %s236, 8
        %s238 = scalar_lea.vmem %s0, %s237
        %s239 = smul.u32 8, %s20
        %s240 = smul.u32 8, %s20
        %v242 = vld [vmem:[%s238] sm:$0xff]
        %v243 = vld [vmem:[%s238 + $0x8] sm:$0xff]
        %v244 = vld [vmem:[%s238 + $0x10] sm:$0xff]
        %v245 = vld [vmem:[%s238 + $0x18] sm:$0xff]
        %v246 = vld [vmem:[%s238 + $0x20] sm:$0xff]
        %v247 = vld [vmem:[%s238 + $0x28] sm:$0xff]
        %v248 = vld [vmem:[%s238 + $0x30] sm:$0xff]
        %v249 = vld [vmem:[%s238 + $0x38] sm:$0xff]
        %v250 = vpack.c.bf16 %v243, %v242
        %v251 = vpack.c.bf16 %v245, %v244
        %v252 = vpack.c.bf16 %v247, %v246
        %v253 = vpack.c.bf16 %v249, %v248
        %v254 = vld [vmem:[%s1] sm:$0xf]
        %v255 = vld [vmem:[%s1 + $0x4] sm:$0xf]
        %v256 = vld [vmem:[%s1 + $0x8] sm:$0xf]
        %v257 = vld [vmem:[%s1 + $0xc] sm:$0xf]
        %v262 = vunpack.c.l.b16 %v254
        %v263 = vunpack.c.l.b16 %v255
        %v264 = vunpack.c.l.b16 %v256
        %v265 = vunpack.c.l.b16 %v257
        %v266 = vpack.c.b16 %v263, %v262
        %v267 = vpack.c.b16 %v265, %v264
        %vm270 = vcmask 261120
        %v272 = vsel %vm270, %v250, 0
        %v275 = vsel %vm270, %v251, 0
        %v278 = vsel %vm270, %v252, 0
        %v281 = vsel %vm270, %v253, 0
        %283 = vmatprep.subr.bf16.mxu0 0
        %284 = vmatpush1.bf16.msra.mxu0 %v266
        %285 = vmatprep.subr.bf16.mxu0 0
        %286 = vmatpush1.bf16.msra.mxu0 %v267
        %287 = vmatprep.subr.bf16.mxu0 0
        %288 = vmatpush1.bf16.msra.mxu0 0
        %289 = vmatprep.subr.bf16.mxu0 0
        %290 = vmatpush1.bf16.msra.mxu0 0
        %291 = vmatprep.subr.bf16.mxu0 0
        %292 = vmatpush1.bf16.msra.mxu0 0
        %293 = vmatprep.subr.bf16.mxu0 0
        %294 = vmatpush1.bf16.msra.mxu0 0
        %295 = vmatprep.subr.bf16.mxu0 0
        %296 = vmatpush1.bf16.msra.mxu0 0
        %297 = vmatprep.subr.bf16.mxu0 0
        %298 = vmatpush1.bf16.msra.mxu0 0
        %299 = vmatprep.subr.bf16.mxu0 0
        %300 = vmatpush1.bf16.msra.mxu0 0
        %301 = vmatprep.subr.bf16.mxu0 0
        %302 = vmatpush1.bf16.msra.mxu0 0
        %303 = vmatprep.subr.bf16.mxu0 0
        %304 = vmatpush1.bf16.msra.mxu0 0
        %305 = vmatprep.subr.bf16.mxu0 0
        %306 = vmatpush1.bf16.msra.mxu0 0
        %307 = vmatprep.subr.bf16.mxu0 0
        %308 = vmatpush1.bf16.msra.mxu0 0
        %309 = vmatprep.subr.bf16.mxu0 0
        %310 = vmatpush1.bf16.msra.mxu0 0
        %311 = vmatprep.subr.bf16.mxu0 0
        %312 = vmatpush1.bf16.msra.mxu0 0
        %313 = vmatprep.subr.bf16.mxu0 0
        %314 = vmatpush1.bf16.msra.mxu0 0
        %315 = vmatprep.mubr.bf16.mxu0 0
        %316 = vmatmul.mubr.bf16.gmra.mrb[0].mxu0 %v272
        %v317 = vpop.f32.mrb[0].mxu0
        %v318 = vadd.f32 0.0, %v317
        %v319 = vpop.f32.mrb[0].mxu0
        %v320 = vpop.f32.mrb[0].mxu0
        %v321 = vadd.f32 0.0, %v320
        %v322 = vpop.f32.mrb[0].mxu0
        %323 = vmatprep.mubr.bf16.mxu0 0
        %324 = vmatmul.mubr.bf16.gmra.mrb[0].mxu0 %v275
        %v325 = vpop.f32.mrb[0].mxu0
        %v326 = vadd.f32 0.0, %v325
        %v327 = vpop.f32.mrb[0].mxu0
        %v328 = vpop.f32.mrb[0].mxu0
        %v329 = vadd.f32 0.0, %v328
        %v330 = vpop.f32.mrb[0].mxu0
        %331 = vmatprep.mubr.bf16.mxu0 0
        %332 = vmatmul.mubr.bf16.gmra.mrb[0].mxu0 %v278
        %v333 = vpop.f32.mrb[0].mxu0
        %v334 = vadd.f32 0.0, %v333
        %v335 = vpop.f32.mrb[0].mxu0
        %v336 = vpop.f32.mrb[0].mxu0
        %v337 = vadd.f32 0.0, %v336
        %v338 = vpop.f32.mrb[0].mxu0
        %339 = vmatprep.mubr.bf16.mxu0 0
        %340 = vmatmul.mubr.bf16.gmra.mrb[0].mxu0 %v281
        %v341 = vpop.f32.mrb[0].mxu0
        %v342 = vadd.f32 0.0, %v341
        %v343 = vpop.f32.mrb[0].mxu0
        %v344 = vpop.f32.mrb[0].mxu0
        %v345 = vadd.f32 0.0, %v344
        %v346 = vpop.f32.mrb[0].mxu0
        %347 = vdwg.mxu0
        %v348 = vld [vmem:[%s2] sm:$0xff]
        %v349 = vld [vmem:[%s2 + $0x8] sm:$0xff]
        %v350 = vld [vmem:[%s2 + $0x10] sm:$0xff]
        %v351 = vld [vmem:[%s2 + $0x18] sm:$0xff]
        %v352 = vld [vmem:[%s2 + $0x20] sm:$0xff]
        %v353 = vld [vmem:[%s2 + $0x28] sm:$0xff]
        %v354 = vld [vmem:[%s2 + $0x30] sm:$0xff]
        %v355 = vld [vmem:[%s2 + $0x38] sm:$0xff]
        %v356 = vld [vmem:[%s2 + $0x40] sm:$0xff]
        %v357 = vld [vmem:[%s2 + $0x48] sm:$0xff]
        %v358 = vld [vmem:[%s2 + $0x50] sm:$0xff]
        %v359 = vld [vmem:[%s2 + $0x58] sm:$0xff]
        %v360 = vld [vmem:[%s2 + $0x60] sm:$0xff]
        %v361 = vld [vmem:[%s2 + $0x68] sm:$0xff]
        %v362 = vld [vmem:[%s2 + $0x70] sm:$0xff]
        %v363 = vld [vmem:[%s2 + $0x78] sm:$0xff]
        %364 = vmatprep.subr.mxu0 0.0
        %365 = vmatpush1.msra.mxu0 %v348
        %366 = vmatprep.subr.mxu0 0.0
        %367 = vmatpush1.msra.mxu0 %v349
        %368 = vmatprep.subr.mxu0 0.0
        %369 = vmatpush1.msra.mxu0 %v350
        %370 = vmatprep.subr.mxu0 0.0
        %371 = vmatpush1.msra.mxu0 %v351
        %372 = vmatprep.subr.mxu0 0.0
        %373 = vmatpush1.msra.mxu0 %v352
        %374 = vmatprep.subr.mxu0 0.0
        %375 = vmatpush1.msra.mxu0 %v353
        %376 = vmatprep.subr.mxu0 0.0
        %377 = vmatpush1.msra.mxu0 %v354
        %378 = vmatprep.subr.mxu0 0.0
        %379 = vmatpush1.msra.mxu0 %v355
        %380 = vmatprep.subr.mxu0 0.0
        %381 = vmatpush1.msra.mxu0 %v356
        %382 = vmatprep.subr.mxu0 0.0
        %383 = vmatpush1.msra.mxu0 %v357
        %384 = vmatprep.subr.mxu0 0.0
        %385 = vmatpush1.msra.mxu0 %v358
        %386 = vmatprep.subr.mxu0 0.0
        %387 = vmatpush1.msra.mxu0 %v359
        %388 = vmatprep.subr.mxu0 0.0
        %389 = vmatpush1.msra.mxu0 %v360
        %390 = vmatprep.subr.mxu0 0.0
        %391 = vmatpush1.msra.mxu0 %v361
        %392 = vmatprep.subr.mxu0 0.0
        %393 = vmatpush1.msra.mxu0 %v362
        %394 = vmatprep.subr.mxu0 0.0
        %395 = vmatpush1.msra.mxu0 %v363
        %396 = vmatprep.subr.mxu0 0.0
        %397 = vmatpush1.msra.mxu0 0.0
        %398 = vmatprep.subr.mxu0 0.0
        %399 = vmatpush1.msra.mxu0 0.0
        %400 = vmatprep.subr.mxu0 0.0
        %401 = vmatpush1.msra.mxu0 0.0
        %402 = vmatprep.subr.mxu0 0.0
        %403 = vmatpush1.msra.mxu0 0.0
        %404 = vmatprep.subr.mxu0 0.0
        %405 = vmatpush1.msra.mxu0 0.0
        %406 = vmatprep.subr.mxu0 0.0
        %407 = vmatpush1.msra.mxu0 0.0
        %408 = vmatprep.subr.mxu0 0.0
        %409 = vmatpush1.msra.mxu0 0.0
        %410 = vmatprep.subr.mxu0 0.0
        %411 = vmatpush1.msra.mxu0 0.0
        %412 = vmatprep.subr.mxu0 0.0
        %413 = vmatpush1.msra.mxu0 0.0
        %414 = vmatprep.subr.mxu0 0.0
        %415 = vmatpush1.msra.mxu0 0.0
        %416 = vmatprep.subr.mxu0 0.0
        %417 = vmatpush1.msra.mxu0 0.0
        %418 = vmatprep.subr.mxu0 0.0
        %419 = vmatpush1.msra.mxu0 0.0
        %420 = vmatprep.subr.mxu0 0.0
        %421 = vmatpush1.msra.mxu0 0.0
        %422 = vmatprep.subr.mxu0 0.0
        %423 = vmatpush1.msra.mxu0 0.0
        %424 = vmatprep.subr.mxu0 0.0
        %425 = vmatpush1.msra.mxu0 0.0
        %426 = vmatprep.subr.mxu0 0.0
        %427 = vmatpush1.msra.mxu0 0.0
        %428 = vmatprep.mubr.f32.mxu0 0.0
        %429 = vmatmul.mubr.f32.gmra.mrb[0].mxu0 %v318
        %v430 = vpop.f32.mrb[0].mxu0
        %v431 = vadd.f32 0.0, %v430
        %v432 = vpop.f32.mrb[0].mxu0
        %433 = vmatprep.mubr.f32.mxu0 0.0
        %434 = vmatmul.mubr.f32.gmra.mrb[0].mxu0 %v321
        %v435 = vpop.f32.mrb[0].mxu0
        %v436 = vadd.f32 0.0, %v435
        %v437 = vpop.f32.mrb[0].mxu0
        %438 = vmatprep.mubr.f32.mxu0 0.0
        %439 = vmatmul.mubr.f32.gmra.mrb[0].mxu0 %v326
        %v440 = vpop.f32.mrb[0].mxu0
        %v441 = vadd.f32 0.0, %v440
        %v442 = vpop.f32.mrb[0].mxu0
        %443 = vmatprep.mubr.f32.mxu0 0.0
        %444 = vmatmul.mubr.f32.gmra.mrb[0].mxu0 %v329
        %v445 = vpop.f32.mrb[0].mxu0
        %v446 = vadd.f32 0.0, %v445
        %v447 = vpop.f32.mrb[0].mxu0
        %448 = vmatprep.mubr.f32.mxu0 0.0
        %449 = vmatmul.mubr.f32.gmra.mrb[0].mxu0 %v334
        %v450 = vpop.f32.mrb[0].mxu0
        %v451 = vadd.f32 0.0, %v450
        %v452 = vpop.f32.mrb[0].mxu0
        %453 = vmatprep.mubr.f32.mxu0 0.0
        %454 = vmatmul.mubr.f32.gmra.mrb[0].mxu0 %v337
        %v455 = vpop.f32.mrb[0].mxu0
        %v456 = vadd.f32 0.0, %v455
        %v457 = vpop.f32.mrb[0].mxu0
        %458 = vmatprep.mubr.f32.mxu0 0.0
        %459 = vmatmul.mubr.f32.gmra.mrb[0].mxu0 %v342
        %v460 = vpop.f32.mrb[0].mxu0
        %v461 = vadd.f32 0.0, %v460
        %v462 = vpop.f32.mrb[0].mxu0
        %463 = vmatprep.mubr.f32.mxu0 0.0
        %464 = vmatmul.mubr.f32.gmra.mrb[0].mxu0 %v345
        %v465 = vpop.f32.mrb[0].mxu0
        %v466 = vadd.f32 0.0, %v465
        %v467 = vpop.f32.mrb[0].mxu0
        %468 = vdwg.mxu0
        %v469 = vmul.f32 %v318, %v318
        %v470 = vmul.f32 %v321, %v321
        %v471 = vmul.f32 %v326, %v326
        %v472 = vmul.f32 %v329, %v329
        %v473 = vmul.f32 %v334, %v334
        %v474 = vmul.f32 %v337, %v337
        %v475 = vmul.f32 %v342, %v342
        %v476 = vmul.f32 %v345, %v345
        %477 = vmatprep.subr.mxu0 0.0
        %478 = vmatpush1.msra.mxu0 %v348
        %479 = vmatprep.subr.mxu0 0.0
        %480 = vmatpush1.msra.mxu0 %v349
        %481 = vmatprep.subr.mxu0 0.0
        %482 = vmatpush1.msra.mxu0 %v350
        %483 = vmatprep.subr.mxu0 0.0
        %484 = vmatpush1.msra.mxu0 %v351
        %485 = vmatprep.subr.mxu0 0.0
        %486 = vmatpush1.msra.mxu0 %v352
        %487 = vmatprep.subr.mxu0 0.0
        %488 = vmatpush1.msra.mxu0 %v353
        %489 = vmatprep.subr.mxu0 0.0
        %490 = vmatpush1.msra.mxu0 %v354
        %491 = vmatprep.subr.mxu0 0.0
        %492 = vmatpush1.msra.mxu0 %v355
        %493 = vmatprep.subr.mxu0 0.0
        %494 = vmatpush1.msra.mxu0 %v356
        %495 = vmatprep.subr.mxu0 0.0
        %496 = vmatpush1.msra.mxu0 %v357
        %497 = vmatprep.subr.mxu0 0.0
        %498 = vmatpush1.msra.mxu0 %v358
        %499 = vmatprep.subr.mxu0 0.0
        %500 = vmatpush1.msra.mxu0 %v359
        %501 = vmatprep.subr.mxu0 0.0
        %502 = vmatpush1.msra.mxu0 %v360
        %503 = vmatprep.subr.mxu0 0.0
        %504 = vmatpush1.msra.mxu0 %v361
        %505 = vmatprep.subr.mxu0 0.0
        %506 = vmatpush1.msra.mxu0 %v362
        %507 = vmatprep.subr.mxu0 0.0
        %508 = vmatpush1.msra.mxu0 %v363
        %509 = vmatprep.subr.mxu0 0.0
        %510 = vmatpush1.msra.mxu0 0.0
        %511 = vmatprep.subr.mxu0 0.0
        %512 = vmatpush1.msra.mxu0 0.0
        %513 = vmatprep.subr.mxu0 0.0
        %514 = vmatpush1.msra.mxu0 0.0
        %515 = vmatprep.subr.mxu0 0.0
        %516 = vmatpush1.msra.mxu0 0.0
        %517 = vmatprep.subr.mxu0 0.0
        %518 = vmatpush1.msra.mxu0 0.0
        %519 = vmatprep.subr.mxu0 0.0
        %520 = vmatpush1.msra.mxu0 0.0
        %521 = vmatprep.subr.mxu0 0.0
        %522 = vmatpush1.msra.mxu0 0.0
        %523 = vmatprep.subr.mxu0 0.0
        %524 = vmatpush1.msra.mxu0 0.0
        %525 = vmatprep.subr.mxu0 0.0
        %526 = vmatpush1.msra.mxu0 0.0
        %527 = vmatprep.subr.mxu0 0.0
        %528 = vmatpush1.msra.mxu0 0.0
        %529 = vmatprep.subr.mxu0 0.0
        %530 = vmatpush1.msra.mxu0 0.0
        %531 = vmatprep.subr.mxu0 0.0
        %532 = vmatpush1.msra.mxu0 0.0
        %533 = vmatprep.subr.mxu0 0.0
        %534 = vmatpush1.msra.mxu0 0.0
        %535 = vmatprep.subr.mxu0 0.0
        %536 = vmatpush1.msra.mxu0 0.0
        %537 = vmatprep.subr.mxu0 0.0
        %538 = vmatpush1.msra.mxu0 0.0
        %539 = vmatprep.subr.mxu0 0.0
        %540 = vmatpush1.msra.mxu0 0.0
        %541 = vmatprep.mubr.f32.mxu0 0.0
        %542 = vmatmul.mubr.f32.gmra.mrb[0].mxu0 %v469
        %v543 = vpop.f32.mrb[0].mxu0
        %v544 = vadd.f32 0.0, %v543
        %v545 = vpop.f32.mrb[0].mxu0
        %546 = vmatprep.mubr.f32.mxu0 0.0
        %547 = vmatmul.mubr.f32.gmra.mrb[0].mxu0 %v470
        %v548 = vpop.f32.mrb[0].mxu0
        %v549 = vadd.f32 0.0, %v548
        %v550 = vpop.f32.mrb[0].mxu0
        %551 = vmatprep.mubr.f32.mxu0 0.0
        %552 = vmatmul.mubr.f32.gmra.mrb[0].mxu0 %v471
        %v553 = vpop.f32.mrb[0].mxu0
        %v554 = vadd.f32 0.0, %v553
        %v555 = vpop.f32.mrb[0].mxu0
        %556 = vmatprep.mubr.f32.mxu0 0.0
        %557 = vmatmul.mubr.f32.gmra.mrb[0].mxu0 %v472
        %v558 = vpop.f32.mrb[0].mxu0
        %v559 = vadd.f32 0.0, %v558
        %v560 = vpop.f32.mrb[0].mxu0
        %561 = vmatprep.mubr.f32.mxu0 0.0
        %562 = vmatmul.mubr.f32.gmra.mrb[0].mxu0 %v473
        %v563 = vpop.f32.mrb[0].mxu0
        %v564 = vadd.f32 0.0, %v563
        %v565 = vpop.f32.mrb[0].mxu0
        %566 = vmatprep.mubr.f32.mxu0 0.0
        %567 = vmatmul.mubr.f32.gmra.mrb[0].mxu0 %v474
        %v568 = vpop.f32.mrb[0].mxu0
        %v569 = vadd.f32 0.0, %v568
        %v570 = vpop.f32.mrb[0].mxu0
        %571 = vmatprep.mubr.f32.mxu0 0.0
        %572 = vmatmul.mubr.f32.gmra.mrb[0].mxu0 %v475
        %v573 = vpop.f32.mrb[0].mxu0
        %v574 = vadd.f32 0.0, %v573
        %v575 = vpop.f32.mrb[0].mxu0
        %576 = vmatprep.mubr.f32.mxu0 0.0
        %577 = vmatmul.mubr.f32.gmra.mrb[0].mxu0 %v476
        %v578 = vpop.f32.mrb[0].mxu0
        %v579 = vadd.f32 0.0, %v578
        %v580 = vpop.f32.mrb[0].mxu0
        %581 = vdwg.mxu0
        %v582 = vmul.f32 %v431, %v431
        %v583 = vmul.f32 %v436, %v436
        %v584 = vmul.f32 %v441, %v441
        %v585 = vmul.f32 %v446, %v446
        %v586 = vmul.f32 %v451, %v451
        %v587 = vmul.f32 %v456, %v456
        %v588 = vmul.f32 %v461, %v461
        %v589 = vmul.f32 %v466, %v466
        %v590 = vsub.f32 %v544, %v582
        %v591 = vsub.f32 %v549, %v583
        %v592 = vsub.f32 %v554, %v584
        %v593 = vsub.f32 %v559, %v585
        %v594 = vsub.f32 %v564, %v586
        %v595 = vsub.f32 %v569, %v587
        %v596 = vsub.f32 %v574, %v588
        %v597 = vsub.f32 %v579, %v589
        %v598 = vadd.f32 %v590, 1e-05
        %v599 = vadd.f32 %v591, 1e-05
        %v600 = vadd.f32 %v592, 1e-05
        %v601 = vadd.f32 %v593, 1e-05
        %v602 = vadd.f32 %v594, 1e-05
        %v603 = vadd.f32 %v595, 1e-05
        %v604 = vadd.f32 %v596, 1e-05
        %v605 = vadd.f32 %v597, 1e-05
        %v606 = vrsqrt.pop %v598
        %v607 = vrsqrt.pop %v599
        %v608 = vrsqrt.pop %v600
        %v609 = vrsqrt.pop %v601
        %v610 = vrsqrt.pop %v602
        %v611 = vrsqrt.pop %v603
        %v612 = vrsqrt.pop %v604
        %v613 = vrsqrt.pop %v605
        %v614 = vld [vmem:[#allocation2] sm:$0xff]
        %v615 = vld [vmem:[#allocation2 + $0x8] sm:$0xff]
        %vm616 = vcmask 130048
        %v618 = vsel %vm616, %v606, 0
        %v621 = vsel %vm616, %v607, 0
        %v624 = vsel %vm616, %v608, 0
        %v627 = vsel %vm616, %v609, 0
        %v630 = vsel %vm616, %v610, 0
        %v633 = vsel %vm616, %v611, 0
        %v636 = vsel %vm616, %v612, 0
        %v639 = vsel %vm616, %v613, 0
        %641 = vmatprep.subr.mxu0 0.0
        %642 = vmatpush1.msra.mxu0 %v614
        %643 = vmatprep.subr.mxu0 0.0
        %644 = vmatpush1.msra.mxu0 %v615
        %645 = vmatprep.subr.mxu0 0.0
        %646 = vmatpush1.msra.mxu0 0.0
        %647 = vmatprep.subr.mxu0 0.0
        %648 = vmatpush1.msra.mxu0 0.0
        %649 = vmatprep.subr.mxu0 0.0
        %650 = vmatpush1.msra.mxu0 0.0
        %651 = vmatprep.subr.mxu0 0.0
        %652 = vmatpush1.msra.mxu0 0.0
        %653 = vmatprep.subr.mxu0 0.0
        %654 = vmatpush1.msra.mxu0 0.0
        %655 = vmatprep.subr.mxu0 0.0
        %656 = vmatpush1.msra.mxu0 0.0
        %657 = vmatprep.subr.mxu0 0.0
        %658 = vmatpush1.msra.mxu0 0.0
        %659 = vmatprep.subr.mxu0 0.0
        %660 = vmatpush1.msra.mxu0 0.0
        %661 = vmatprep.subr.mxu0 0.0
        %662 = vmatpush1.msra.mxu0 0.0
        %663 = vmatprep.subr.mxu0 0.0
        %664 = vmatpush1.msra.mxu0 0.0
        %665 = vmatprep.subr.mxu0 0.0
        %666 = vmatpush1.msra.mxu0 0.0
        %667 = vmatprep.subr.mxu0 0.0
        %668 = vmatpush1.msra.mxu0 0.0
        %669 = vmatprep.subr.mxu0 0.0
        %670 = vmatpush1.msra.mxu0 0.0
        %671 = vmatprep.subr.mxu0 0.0
        %672 = vmatpush1.msra.mxu0 0.0
        %673 = vmatprep.subr.mxu0 0.0
        %674 = vmatpush1.msra.mxu0 0.0
        %675 = vmatprep.subr.mxu0 0.0
        %676 = vmatpush1.msra.mxu0 0.0
        %677 = vmatprep.subr.mxu0 0.0
        %678 = vmatpush1.msra.mxu0 0.0
        %679 = vmatprep.subr.mxu0 0.0
        %680 = vmatpush1.msra.mxu0 0.0
        %681 = vmatprep.subr.mxu0 0.0
        %682 = vmatpush1.msra.mxu0 0.0
        %683 = vmatprep.subr.mxu0 0.0
        %684 = vmatpush1.msra.mxu0 0.0
        %685 = vmatprep.subr.mxu0 0.0
        %686 = vmatpush1.msra.mxu0 0.0
        %687 = vmatprep.subr.mxu0 0.0
        %688 = vmatpush1.msra.mxu0 0.0
        %689 = vmatprep.subr.mxu0 0.0
        %690 = vmatpush1.msra.mxu0 0.0
        %691 = vmatprep.subr.mxu0 0.0
        %692 = vmatpush1.msra.mxu0 0.0
        %693 = vmatprep.subr.mxu0 0.0
        %694 = vmatpush1.msra.mxu0 0.0
        %695 = vmatprep.subr.mxu0 0.0
        %696 = vmatpush1.msra.mxu0 0.0
        %697 = vmatprep.subr.mxu0 0.0
        %698 = vmatpush1.msra.mxu0 0.0
        %699 = vmatprep.subr.mxu0 0.0
        %700 = vmatpush1.msra.mxu0 0.0
        %701 = vmatprep.subr.mxu0 0.0
        %702 = vmatpush1.msra.mxu0 0.0
        %703 = vmatprep.subr.mxu0 0.0
        %704 = vmatpush1.msra.mxu0 0.0
        %705 = vmatprep.mubr.f32.mxu0 0.0
        %706 = vmatmul.mubr.f32.gmra.mrb[0].mxu0 %v618
        %v707 = vpop.f32.mrb[0].mxu0
        %v708 = vadd.f32 0.0, %v707
        %v709 = vpop.f32.mrb[0].mxu0
        %710 = vmatprep.mubr.f32.mxu0 0.0
        %711 = vmatmul.mubr.f32.gmra.mrb[0].mxu0 %v621
        %v712 = vpop.f32.mrb[0].mxu0
        %v713 = vadd.f32 0.0, %v712
        %v714 = vpop.f32.mrb[0].mxu0
        %715 = vmatprep.mubr.f32.mxu0 0.0
        %716 = vmatmul.mubr.f32.gmra.mrb[0].mxu0 %v624
        %v717 = vpop.f32.mrb[0].mxu0
        %v718 = vadd.f32 0.0, %v717
        %v719 = vpop.f32.mrb[0].mxu0
        %720 = vmatprep.mubr.f32.mxu0 0.0
        %721 = vmatmul.mubr.f32.gmra.mrb[0].mxu0 %v627
        %v722 = vpop.f32.mrb[0].mxu0
        %v723 = vadd.f32 0.0, %v722
        %v724 = vpop.f32.mrb[0].mxu0
        %725 = vmatprep.mubr.f32.mxu0 0.0
        %726 = vmatmul.mubr.f32.gmra.mrb[0].mxu0 %v630
        %v727 = vpop.f32.mrb[0].mxu0
        %v728 = vadd.f32 0.0, %v727
        %v729 = vpop.f32.mrb[0].mxu0
        %730 = vmatprep.mubr.f32.mxu0 0.0
        %731 = vmatmul.mubr.f32.gmra.mrb[0].mxu0 %v633
        %v732 = vpop.f32.mrb[0].mxu0
        %v733 = vadd.f32 0.0, %v732
        %v734 = vpop.f32.mrb[0].mxu0
        %735 = vmatprep.mubr.f32.mxu0 0.0
        %736 = vmatmul.mubr.f32.gmra.mrb[0].mxu0 %v636
        %v737 = vpop.f32.mrb[0].mxu0
        %v738 = vadd.f32 0.0, %v737
        %v739 = vpop.f32.mrb[0].mxu0
        %740 = vmatprep.mubr.f32.mxu0 0.0
        %741 = vmatmul.mubr.f32.gmra.mrb[0].mxu0 %v639
        %v742 = vpop.f32.mrb[0].mxu0
        %v743 = vadd.f32 0.0, %v742
        %v744 = vpop.f32.mrb[0].mxu0
        %745 = vdwg.mxu0
        %v746 = vsub.f32 0.0, %v431
        %v747 = vsub.f32 0.0, %v436
        %v748 = vsub.f32 0.0, %v441
        %v749 = vsub.f32 0.0, %v446
        %v750 = vsub.f32 0.0, %v451
        %v751 = vsub.f32 0.0, %v456
        %v752 = vsub.f32 0.0, %v461
        %v753 = vsub.f32 0.0, %v466
        %v754 = vmul.f32 %v746, %v606
        %v755 = vmul.f32 %v747, %v607
        %v756 = vmul.f32 %v748, %v608
        %v757 = vmul.f32 %v749, %v609
        %v758 = vmul.f32 %v750, %v610
        %v759 = vmul.f32 %v751, %v611
        %v760 = vmul.f32 %v752, %v612
        %v761 = vmul.f32 %v753, %v613
        %v762 = vmul.f32 %v318, %v708
        %v763 = vmul.f32 %v321, %v713
        %v764 = vmul.f32 %v326, %v718
        %v765 = vmul.f32 %v329, %v723
        %v766 = vmul.f32 %v334, %v728
        %v767 = vmul.f32 %v337, %v733
        %v768 = vmul.f32 %v342, %v738
        %v769 = vmul.f32 %v345, %v743
        %v770 = vld [vmem:[%s4] sm:$0x1]
        %v772 = vlaneseq
        %v773 = vshrl.u32 %v772, 7
        %v774 = vsub.s32 0, %v773
        %v775 = vrot.slane %v770, %v774
        %v778 = vsel %vm616, %v754, 0
        %v781 = vsel %vm616, %v755, 0
        %v784 = vsel %vm616, %v756, 0
        %v787 = vsel %vm616, %v757, 0
        %v790 = vsel %vm616, %v758, 0
        %v793 = vsel %vm616, %v759, 0
        %v796 = vsel %vm616, %v760, 0
        %v799 = vsel %vm616, %v761, 0
        %801 = vmatprep.subr.mxu0 0.0
        %802 = vmatpush1.msra.mxu0 %v614
        %803 = vmatprep.subr.mxu0 0.0
        %804 = vmatpush1.msra.mxu0 %v615
        %805 = vmatprep.subr.mxu0 0.0
        %806 = vmatpush1.msra.mxu0 0.0
        %807 = vmatprep.subr.mxu0 0.0
        %808 = vmatpush1.msra.mxu0 0.0
        %809 = vmatprep.subr.mxu0 0.0
        %810 = vmatpush1.msra.mxu0 0.0
        %811 = vmatprep.subr.mxu0 0.0
        %812 = vmatpush1.msra.mxu0 0.0
        %813 = vmatprep.subr.mxu0 0.0
        %814 = vmatpush1.msra.mxu0 0.0
        %815 = vmatprep.subr.mxu0 0.0
        %816 = vmatpush1.msra.mxu0 0.0
        %817 = vmatprep.subr.mxu0 0.0
        %818 = vmatpush1.msra.mxu0 0.0
        %819 = vmatprep.subr.mxu0 0.0
        %820 = vmatpush1.msra.mxu0 0.0
        %821 = vmatprep.subr.mxu0 0.0
        %822 = vmatpush1.msra.mxu0 0.0
        %823 = vmatprep.subr.mxu0 0.0
        %824 = vmatpush1.msra.mxu0 0.0
        %825 = vmatprep.subr.mxu0 0.0
        %826 = vmatpush1.msra.mxu0 0.0
        %827 = vmatprep.subr.mxu0 0.0
        %828 = vmatpush1.msra.mxu0 0.0
        %829 = vmatprep.subr.mxu0 0.0
        %830 = vmatpush1.msra.mxu0 0.0
        %831 = vmatprep.subr.mxu0 0.0
        %832 = vmatpush1.msra.mxu0 0.0
        %833 = vmatprep.subr.mxu0 0.0
        %834 = vmatpush1.msra.mxu0 0.0
        %835 = vmatprep.subr.mxu0 0.0
        %836 = vmatpush1.msra.mxu0 0.0
        %837 = vmatprep.subr.mxu0 0.0
        %838 = vmatpush1.msra.mxu0 0.0
        %839 = vmatprep.subr.mxu0 0.0
        %840 = vmatpush1.msra.mxu0 0.0
        %841 = vmatprep.subr.mxu0 0.0
        %842 = vmatpush1.msra.mxu0 0.0
        %843 = vmatprep.subr.mxu0 0.0
        %844 = vmatpush1.msra.mxu0 0.0
        %845 = vmatprep.subr.mxu0 0.0
        %846 = vmatpush1.msra.mxu0 0.0
        %847 = vmatprep.subr.mxu0 0.0
        %848 = vmatpush1.msra.mxu0 0.0
        %849 = vmatprep.subr.mxu0 0.0
        %850 = vmatpush1.msra.mxu0 0.0
        %851 = vmatprep.subr.mxu0 0.0
        %852 = vmatpush1.msra.mxu0 0.0
        %853 = vmatprep.subr.mxu0 0.0
        %854 = vmatpush1.msra.mxu0 0.0
        %855 = vmatprep.subr.mxu0 0.0
        %856 = vmatpush1.msra.mxu0 0.0
        %857 = vmatprep.subr.mxu0 0.0
        %858 = vmatpush1.msra.mxu0 0.0
        %859 = vmatprep.subr.mxu0 0.0
        %860 = vmatpush1.msra.mxu0 0.0
        %861 = vmatprep.subr.mxu0 0.0
        %862 = vmatpush1.msra.mxu0 0.0
        %863 = vmatprep.subr.mxu0 0.0
        %864 = vmatpush1.msra.mxu0 0.0
        %865 = vmatprep.mubr.f32.mxu0 0.0
        %866 = vmatmul.mubr.f32.gmra.mrb[0].mxu0 %v778
        %v867 = vpop.f32.mrb[0].mxu0
        %v868 = vadd.f32 %v775, %v867
        %v869 = vpop.f32.mrb[0].mxu0
        %870 = vmatprep.mubr.f32.mxu0 0.0
        %871 = vmatmul.mubr.f32.gmra.mrb[0].mxu0 %v781
        %v872 = vpop.f32.mrb[0].mxu0
        %v873 = vadd.f32 %v775, %v872
        %v874 = vpop.f32.mrb[0].mxu0
        %875 = vmatprep.mubr.f32.mxu0 0.0
        %876 = vmatmul.mubr.f32.gmra.mrb[0].mxu0 %v784
        %v877 = vpop.f32.mrb[0].mxu0
        %v878 = vadd.f32 %v775, %v877
        %v879 = vpop.f32.mrb[0].mxu0
        %880 = vmatprep.mubr.f32.mxu0 0.0
        %881 = vmatmul.mubr.f32.gmra.mrb[0].mxu0 %v787
        %v882 = vpop.f32.mrb[0].mxu0
        %v883 = vadd.f32 %v775, %v882
        %v884 = vpop.f32.mrb[0].mxu0
        %885 = vmatprep.mubr.f32.mxu0 0.0
        %886 = vmatmul.mubr.f32.gmra.mrb[0].mxu0 %v790
        %v887 = vpop.f32.mrb[0].mxu0
        %v888 = vadd.f32 %v775, %v887
        %v889 = vpop.f32.mrb[0].mxu0
        %890 = vmatprep.mubr.f32.mxu0 0.0
        %891 = vmatmul.mubr.f32.gmra.mrb[0].mxu0 %v793
        %v892 = vpop.f32.mrb[0].mxu0
        %v893 = vadd.f32 %v775, %v892
        %v894 = vpop.f32.mrb[0].mxu0
        %895 = vmatprep.mubr.f32.mxu0 0.0
        %896 = vmatmul.mubr.f32.gmra.mrb[0].mxu0 %v796
        %v897 = vpop.f32.mrb[0].mxu0
        %v898 = vadd.f32 %v775, %v897
        %v899 = vpop.f32.mrb[0].mxu0
        %900 = vmatprep.mubr.f32.mxu0 0.0
        %901 = vmatmul.mubr.f32.gmra.mrb[0].mxu0 %v799
        %v902 = vpop.f32.mrb[0].mxu0
        %v903 = vadd.f32 %v775, %v902
        %v904 = vpop.f32.mrb[0].mxu0
        %905 = vdwg.mxu0
        %v906 = vadd.f32 %v762, %v868
        %v907 = vadd.f32 %v763, %v873
        %v908 = vadd.f32 %v764, %v878
        %v909 = vadd.f32 %v765, %v883
        %v910 = vadd.f32 %v766, %v888
        %v911 = vadd.f32 %v767, %v893
        %v912 = vadd.f32 %v768, %v898
        %v913 = vadd.f32 %v769, %v903
        %914 = vst.msk [vmem:[%s233] sm:$0xff] %vm270, %v906
        %915 = vst.msk [vmem:[%s233 + $0x20] sm:$0xff] %vm270, %v907
        %916 = vst.msk [vmem:[%s233 + $0x40] sm:$0xff] %vm270, %v908
        %917 = vst.msk [vmem:[%s233 + $0x60] sm:$0xff] %vm270, %v909
        %918 = vst.msk [vmem:[%s233 + $0x80] sm:$0xff] %vm270, %v910
        %919 = vst.msk [vmem:[%s233 + $0xa0] sm:$0xff] %vm270, %v911
        %920 = vst.msk [vmem:[%s233 + $0xc0] sm:$0xff] %vm270, %v912
        %921 = vst.msk [vmem:[%s233 + $0xe0] sm:$0xff] %vm270, %v913
        %930 = vrot.lane.b32.xlu0 %v906, 96
        %v931 = vpop.permute.xlu0 %930
        %932 = vrot.lane.b32.xlu0 %v907, 96
        %v933 = vpop.permute.xlu0 %932
        %934 = vrot.lane.b32.xlu0 %v908, 96
        %v935 = vpop.permute.xlu0 %934
        %936 = vrot.lane.b32.xlu0 %v909, 96
        %v937 = vpop.permute.xlu0 %936
        %938 = vrot.lane.b32.xlu0 %v910, 96
        %v939 = vpop.permute.xlu0 %938
        %940 = vrot.lane.b32.xlu0 %v911, 96
        %v941 = vpop.permute.xlu0 %940
        %942 = vrot.lane.b32.xlu0 %v912, 96
        %v943 = vpop.permute.xlu0 %942
        %944 = vrot.lane.b32.xlu0 %v913, 96
        %v945 = vpop.permute.xlu0 %944
        %s954 = scalar_lea.vmem %s233, 8 [#allocation5]
        %955 = vst.msk [vmem:[%s954] sm:$0xff] %vm270, %v931
        %956 = vst.msk [vmem:[%s954 + $0x20] sm:$0xff] %vm270, %v933
        %957 = vst.msk [vmem:[%s954 + $0x40] sm:$0xff] %vm270, %v935
        %958 = vst.msk [vmem:[%s954 + $0x60] sm:$0xff] %vm270, %v937
        %959 = vst.msk [vmem:[%s954 + $0x80] sm:$0xff] %vm270, %v939
        %960 = vst.msk [vmem:[%s954 + $0xa0] sm:$0xff] %vm270, %v941
        %961 = vst.msk [vmem:[%s954 + $0xc0] sm:$0xff] %vm270, %v943
        %962 = vst.msk [vmem:[%s954 + $0xe0] sm:$0xff] %vm270, %v945
        %963 = vrot.lane.b32.xlu0 %v906, 64
        %v964 = vpop.permute.xlu0 %963
        %965 = vrot.lane.b32.xlu0 %v907, 64
        %v966 = vpop.permute.xlu0 %965
        %967 = vrot.lane.b32.xlu0 %v908, 64
        %v968 = vpop.permute.xlu0 %967
        %969 = vrot.lane.b32.xlu0 %v909, 64
        %v970 = vpop.permute.xlu0 %969
        %971 = vrot.lane.b32.xlu0 %v910, 64
        %v972 = vpop.permute.xlu0 %971
        %973 = vrot.lane.b32.xlu0 %v911, 64
        %v974 = vpop.permute.xlu0 %973
        %975 = vrot.lane.b32.xlu0 %v912, 64
        %v976 = vpop.permute.xlu0 %975
        %977 = vrot.lane.b32.xlu0 %v913, 64
        %v978 = vpop.permute.xlu0 %977
        %s987 = scalar_lea.vmem %s233, 16 [#allocation5]
        %988 = vst.msk [vmem:[%s987] sm:$0xff] %vm270, %v964
        %989 = vst.msk [vmem:[%s987 + $0x20] sm:$0xff] %vm270, %v966
        %990 = vst.msk [vmem:[%s987 + $0x40] sm:$0xff] %vm270, %v968
        %991 = vst.msk [vmem:[%s987 + $0x60] sm:$0xff] %vm270, %v970
        %992 = vst.msk [vmem:[%s987 + $0x80] sm:$0xff] %vm270, %v972
        %993 = vst.msk [vmem:[%s987 + $0xa0] sm:$0xff] %vm270, %v974
        %994 = vst.msk [vmem:[%s987 + $0xc0] sm:$0xff] %vm270, %v976
        %995 = vst.msk [vmem:[%s987 + $0xe0] sm:$0xff] %vm270, %v978
        %996 = vrot.lane.b32.xlu0 %v906, 32
        %v997 = vpop.permute.xlu0 %996
        %998 = vrot.lane.b32.xlu0 %v907, 32
        %v999 = vpop.permute.xlu0 %998
        %1000 = vrot.lane.b32.xlu0 %v908, 32
        %v1001 = vpop.permute.xlu0 %1000
        %1002 = vrot.lane.b32.xlu0 %v909, 32
        %v1003 = vpop.permute.xlu0 %1002
        %1004 = vrot.lane.b32.xlu0 %v910, 32
        %v1005 = vpop.permute.xlu0 %1004
        %1006 = vrot.lane.b32.xlu0 %v911, 32
        %v1007 = vpop.permute.xlu0 %1006
        %1008 = vrot.lane.b32.xlu0 %v912, 32
        %v1009 = vpop.permute.xlu0 %1008
        %1010 = vrot.lane.b32.xlu0 %v913, 32
        %v1011 = vpop.permute.xlu0 %1010
        %s1020 = scalar_lea.vmem %s233, 24 [#allocation5]
        %1021 = vst.msk [vmem:[%s1020] sm:$0xff] %vm270, %v997
        %1022 = vst.msk [vmem:[%s1020 + $0x20] sm:$0xff] %vm270, %v999
        %1023 = vst.msk [vmem:[%s1020 + $0x40] sm:$0xff] %vm270, %v1001
        %1024 = vst.msk [vmem:[%s1020 + $0x60] sm:$0xff] %vm270, %v1003
        %1025 = vst.msk [vmem:[%s1020 + $0x80] sm:$0xff] %vm270, %v1005
        %1026 = vst.msk [vmem:[%s1020 + $0xa0] sm:$0xff] %vm270, %v1007
        %1027 = vst.msk [vmem:[%s1020 + $0xc0] sm:$0xff] %vm270, %v1009
        %1028 = vst.msk [vmem:[%s1020 + $0xe0] sm:$0xff] %vm270, %v1011
        %s1029 = sand.u32 %s138, 1
        %s1030 = scalar_lea.sflag [#allocation4], %s1029
        %s1031 = sand.u32 %s138, 1
        %s1032 = smul.addr %s1031, 256
        %s1033 = scalar_lea.vmem [#allocation5], %s1032
        // Predicated region
        $region45: #{tpu_custom_call.1} parent=39 // pred_check
          %p1034 = pneg %p148
        $region46: #{tpu_custom_call.1} parent=39 // pred_check_branch
          %1036 = sbr.rel (%p1034) target = $region48
        $region47: #{tpu_custom_call.1} parent=39 // pred_region
          %s1037 = smul.u32 8, %s20
          %s1039 = ssub.s32 4096, 4096
          %1040 = vsyncadd %s1030, %s1039
          %s1041 = smul.addr %s1037, 4
          %s1042 = smul.addr %s1041, 128
          %s1043 = scalar_lea.hbm %s5, %s1042
          %s1044 = sshll.u32 %s1033, 4
          %s1045 = int_to_ptr.vmem [resolvable:$true] %s1044
          %1050 = dma.vmem_to_hbm [thread:$0]  %s1045, 4096, %s1043, %s1030, 128, 128, 8
        $region48: #{tpu_custom_call.1} parent=39 // pred_fallthru
          _
      $region40: #{tpu_custom_call.1} parent=5 // pred_fallthru
        _
      %p1051 = scmp.le.s32.totalorder 2, %s15
      // Predicated region
      $region49: #{tpu_custom_call.1} parent=5 // pred_check
        %p1052 = pneg %p1051
      $region50: #{tpu_custom_call.1} parent=5 // pred_check_branch
        %1054 = sbr.rel (%p1052) target = $region52
      $region51: #{tpu_custom_call.1} parent=5 // pred_region
        %s1055 = ssub.s32 %s15, 2
        // Predicated region
        $region53: #{tpu_custom_call.1} parent=51 // pred_check
          %p1056 = pneg %p154
        $region54: #{tpu_custom_call.1} parent=51 // pred_check_branch
          %1058 = sbr.rel (%p1056) target = $region56
        $region55: #{tpu_custom_call.1} parent=51 // pred_region
          %s1059 = sand.u32 %s139, 1
          %s1060 = scalar_lea.sflag [#allocation4], %s1059
          %s1061 = sand.u32 %s139, 1
          %s1062 = smul.addr %s1061, 256
          %s1063 = scalar_lea.vmem [#allocation5], %s1062
          %1064 = dma.done %s1060, 4096
        $region56: #{tpu_custom_call.1} parent=51 // pred_fallthru
          _
      $region52: #{tpu_custom_call.1} parent=5 // pred_fallthru
        _
    $region6: #{tpu_custom_call.1} parent=1 // loop_footer
      %s19 = sadd.s32 1, %s15
    $region7: #{tpu_custom_call.1} parent=1 // loop_footer_branch
      %14 = sbr.rel target = $region3
    $region8: #{tpu_custom_call.1} parent=1 // loop_exit
      _
    %1065 = vsyncpa [#allocation3], 1
    %s1066 = scalar_lea.sflag [#allocation3], 1
    %1067 = vsyncpa %s1066, 1
    %1068 = vsyncpa [#allocation4], 1
    %s1069 = scalar_lea.sflag [#allocation4], 1
    %1070 = vsyncpa %s1069, 1

</llo_original>
